<compile_context>
chip_gen: v6e
topology: v6e:2x2x1
jax: 0.10.0
libtpu: 0.0.40
codegen_flags: <defaults>
</compile_context>

<pallas_src>
import jax
import jax.numpy as jnp
from jax.experimental import pallas as pl
from jax.experimental.pallas import tpu as pltpu

S = 30.0  # scale factor `s` from the module


def _vmem_budget():
    """(vmem_limit_bytes, tile_working_set_budget) for the local TPU generation."""
    try:
        kind = jax.devices()[0].device_kind.lower()
    except Exception:
        kind = ""
    if ("v5" in kind) or ("v6" in kind):
        # 128 MiB physical VMEM per TensorCore: bigger blocks amortize the
        # ~0.35us per-grid-step overhead and DMA ramp.
        return 64 * 1024 * 1024, 24 * 1024 * 1024
    # v7x (64 MiB physical per TC, both cores active) and unknown chips:
    # stay conservative.
    return 32 * 1024 * 1024, 12 * 1024 * 1024


def _pick_row_tile(n, c, itemsize, budget_bytes):
    # Align tn to the native sublane packing of the streamed logits dtype.
    align = max(8, 32 // max(1, itemsize))
    # Working set per row: double-buffered input block + ~4 live f32
    # (tn, c) temporaries (x, exp, masked selects, reduction partials).
    per_row_bytes = 2 * c * itemsize + 4 * c * 4
    tn = budget_bytes // max(1, per_row_bytes)
    tn = max(align, min(512, (tn // align) * align))
    if n >= 64:
        # Guarantee a multi-block grid (>= ~4 blocks) so v7x's two TensorCores
        # get sharded work and the leading DMA is hidden on all generations.
        cap = max(align, (pl.cdiv(n, 4) // align) * align)
        tn = min(tn, cap)
    if n <= tn:
        return n  # single block spanning the full row extent (valid for any n)
    return tn


def _make_ala_kernel(tn, c, n, weighted):
    needs_row_mask = (n % tn) != 0

    def kernel(*refs):
        if weighted:
            logits_ref, target_ref, at_ref, bt_ref, wt_ref, out_ref = refs
        else:
            logits_ref, target_ref, at_ref, bt_ref, out_ref = refs

        x = logits_ref[...].astype(jnp.float32)            # (tn, c)
        tgt = target_ref[...]                              # (tn, 1) int32
        a_t = at_ref[...]                                  # (tn, 1) = 1 + m_t/2
        b_t = bt_ref[...]                                  # (tn, 1) = s*m_t/2

        if needs_row_mask:
            # Last block is partial: neutralize garbage logit rows before any
            # math (OOB block padding contents are undefined).  All row-wise
            # side inputs are zero-padded in the wrapper, so they are safe.
            base = pl.program_id(0) * tn
            rows = jax.lax.broadcasted_iota(jnp.int32, (tn, 1), 0) + base
            valid = rows < n                                # (tn, 1) bool
            x = jnp.where(valid, x, 0.0)

        # (1, c) iota broadcast against (tn, 1) targets -> (tn, c) onehot.
        cols = jax.lax.broadcasted_iota(jnp.int32, (1, c), 1)
        onehot = cols == tgt                                # (tn, c) bool

        # Corrected LSE: max + exp over the RAW logits, target lane excluded
        # from the sum, adjusted target logit re-inserted with per-row scalars.
        mx = jnp.max(x, axis=1, keepdims=True)              # (tn, 1)
        e = jnp.exp(x - mx)                                 # (tn, c), args <= 0
        s_nt = jnp.sum(jnp.where(onehot, 0.0, e), axis=1, keepdims=True)
        x_t = jnp.sum(jnp.where(onehot, x, 0.0), axis=1, keepdims=True)

        cand_t = x_t * a_t - b_t                            # adjusted target logit
        mx2 = jnp.maximum(mx, cand_t)                       # rescale: no overflow
        s2 = s_nt * jnp.exp(mx - mx2) + jnp.exp(cand_t - mx2)
        per_row = jnp.log(s2) + mx2 - cand_t                # (tn, 1) CE per row

        if weighted:
            w_i = wt_ref[...]                               # (tn, 1), 0 for padded rows
            numer = jnp.sum(w_i * per_row)
            denom = jnp.sum(w_i)
        elif needs_row_mask:
            validf = valid.astype(jnp.float32)
            numer = jnp.sum(validf * per_row)
            denom = jnp.sum(validf)
        else:
            numer = jnp.sum(per_row)
            denom = jnp.float32(tn)

        # Lane-dense (8,128) partial block: lane 0 = numer, lane 1 = denom.
        lanes = jax.lax.broadcasted_iota(jnp.int32, (8, 128), 1)
        out_ref[0] = jnp.where(lanes == 0, numer,
                               jnp.where(lanes == 1, denom, 0.0))

    return kernel


def ala_loss(output_logits, target, m_list, per_cls_weights=None, s=S,
             row_tile=None):
    """output_logits: [N, C] float (bf16 preferred on v5e; any float dtype),
    target: [N] int, m_list: [C] float, per_cls_weights: optional [C] float."""
    n, c = output_logits.shape
    weighted = per_cls_weights is not None

    m = jnp.asarray(m_list, jnp.float32)
    tgt = jnp.asarray(target, jnp.int32)
    m_t = m[tgt]                                            # [N] gather (cheap)
    a_t = (1.0 + 0.5 * m_t).reshape(n, 1)
    b_t = (0.5 * float(s)) * m_t.reshape(n, 1)
    tgt2d = tgt.reshape(n, 1)

    itemsize = jnp.dtype(output_logits.dtype).itemsize
    vmem_limit, tile_budget = _vmem_budget()
    tn = row_tile if row_tile is not None else _pick_row_tile(
        n, c, itemsize, tile_budget)
    num_blocks = pl.cdiv(n, tn)
    n_pad = num_blocks * tn

    def pad_rows(arr):
        if n_pad == n:
            return arr
        return jnp.pad(arr, ((0, n_pad - n), (0, 0)))       # zero padding

    kernel = _make_ala_kernel(tn, c, n, weighted)

    row_spec = pl.BlockSpec((tn, 1), lambda i: (i, 0))
    in_specs = [
        pl.BlockSpec((tn, c), lambda i: (i, 0)),             # logits row block
        row_spec,                                            # target
        row_spec,                                            # a_t = 1 + m_t/2
        row_spec,                                            # b_t = s*m_t/2
    ]
    args = [output_logits, pad_rows(tgt2d), pad_rows(a_t), pad_rows(b_t)]
    if weighted:
        w = jnp.asarray(per_cls_weights, jnp.float32)
        w_t = w[tgt].reshape(n, 1)
        in_specs.append(row_spec)
        args.append(pad_rows(w_t))

    cost = pl.CostEstimate(
        flops=6 * n * c,
        transcendentals=n * c,
        bytes_accessed=n * c * itemsize + n_pad * 16 + num_blocks * 8 * 128 * 4,
    )

    partials = pl.pallas_call(
        kernel,
        out_shape=jax.ShapeDtypeStruct((num_blocks, 8, 128), jnp.float32),
        grid=(num_blocks,),
        in_specs=in_specs,
        out_specs=pl.BlockSpec((1, 8, 128), lambda i: (i, 0, 0)),
        compiler_params=pltpu.CompilerParams(
            dimension_semantics=("parallel",),
            vmem_limit_bytes=vmem_limit,
        ),
        cost_estimate=cost,
    )(*args)

    numer = jnp.sum(partials[:, 0, 0])
    denom = jnp.sum(partials[:, 0, 1])
    return numer / denom


def _reference_loss(logits, target, m_list, per_cls_weights=None, s=S):
    # Pure-JAX reference mirroring the PyTorch forward.
    x = logits.astype(jnp.float32)
    n, c = x.shape
    onehot = jax.nn.one_hot(target, c, dtype=jnp.float32)
    hardness = (1.0 - x / s) / 2.0 * onehot
    adjust = m_list[target][:, None] * onehot
    final = x - hardness * adjust * s
    lse = jax.scipy.special.logsumexp(final, axis=1)
    picked = jnp.take_along_axis(final, target[:, None], axis=1)[:, 0]
    per_row = lse - picked
    if per_cls_weights is None:
        return jnp.mean(per_row)
    w_i = per_cls_weights[target]
    return jnp.sum(w_i * per_row) / jnp.sum(w_i)


if __name__ == "__main__":
    key = jax.random.PRNGKey(0)
    N, C = 8, 16  # small batch / class count

    # Deterministic synthetic long-tailed class counts (module __init__ input).
    cls_num_list = jnp.array([1000.0 / (1.5 ** i) for i in range(C)],
                             dtype=jnp.float32)
    # m_list = log(2) / log(cls_num / cls_num.min() + 1)
    m_list = jnp.log(2.0) / jnp.log(cls_num_list / jnp.min(cls_num_list) + 1.0)

    k1, k2, k3, k4 = jax.random.split(key, 4)
    logits = jax.random.normal(k1, (N, C), dtype=jnp.float32) * 5.0
    target = jax.random.randint(k2, (N,), 0, C, dtype=jnp.int32)

    # 1) default (unweighted, f32) path
    loss = jax.block_until_ready(ala_loss(logits, target, m_list))
    ref = _reference_loss(logits, target, m_list)
    assert jnp.allclose(loss, ref, rtol=1e-5, atol=1e-5), (loss, ref)

    # 2) multi-block grid with a partial (row-masked) last block
    N2 = 20
    logits2 = jax.random.normal(k3, (N2, C), dtype=jnp.float32) * 5.0
    target2 = jax.random.randint(k4, (N2,), 0, C, dtype=jnp.int32)
    loss2 = jax.block_until_ready(ala_loss(logits2, target2, m_list, row_tile=8))
    ref2 = _reference_loss(logits2, target2, m_list)
    assert jnp.allclose(loss2, ref2, rtol=1e-5, atol=1e-5), (loss2, ref2)

    # 3) weighted path (reweight_epoch branch of the module)
    beta = 0.9999
    eff = 1.0 - jnp.power(beta, cls_num_list)
    w = (1.0 - beta) / eff
    w = w / jnp.sum(w) * C
    loss3 = jax.block_until_ready(
        ala_loss(logits, target, m_list, per_cls_weights=w))
    ref3 = _reference_loss(logits, target, m_list, per_cls_weights=w)
    assert jnp.allclose(loss3, ref3, rtol=1e-5, atol=1e-5), (loss3, ref3)

    # 4) bf16 logits fed straight through (f32 cast happens in-kernel;
    #    preferred dtype on v5e where the kernel is HBM-bound)
    logits_bf16 = logits.astype(jnp.bfloat16)
    loss4 = jax.block_until_ready(ala_loss(logits_bf16, target, m_list))
    ref4 = _reference_loss(logits_bf16, target, m_list)
    assert jnp.allclose(loss4, ref4, rtol=1e-4, atol=1e-4), (loss4, ref4)

    print("KERNEL_OK")
</pallas_src>

<mosaic_0001>
module attributes {stable_mosaic.version = 11 : i64} {
  func.func @kernel(%arg0: i32, %arg1: memref<8x16xf32, #tpu.memory_space<vmem>>, %arg2: memref<8x1xi32, #tpu.memory_space<vmem>>, %arg3: memref<8x1xf32, #tpu.memory_space<vmem>>, %arg4: memref<8x1xf32, #tpu.memory_space<vmem>>, %arg5: memref<1x8x128xf32, #tpu.memory_space<vmem>>) attributes {dimension_semantics = [#tpu.dimension_semantics<parallel>], iteration_bounds = array<i64: 1>, scalar_prefetch = 0 : i64, scratch_operands = 0 : i64, tpu.core_type = #tpu.core_type<tc>, window_params = [{transform_indices = @transform_0, window_bounds = array<i64: 8, 16>}, {transform_indices = @transform_1, window_bounds = array<i64: 8, 1>}, {transform_indices = @transform_2, window_bounds = array<i64: 8, 1>}, {transform_indices = @transform_3, window_bounds = array<i64: 8, 1>}, {transform_indices = @transform_4, window_bounds = array<i64: 1, 8, 128>}]} {
    %c0 = arith.constant 0 : index
    %c0_0 = arith.constant 0 : index
    %0 = vector.load %arg1[%c0, %c0_0] : memref<8x16xf32, #tpu.memory_space<vmem>>, vector<8x16xf32>
    %c0_1 = arith.constant 0 : index
    %c0_2 = arith.constant 0 : index
    %1 = vector.load %arg2[%c0_1, %c0_2] : memref<8x1xi32, #tpu.memory_space<vmem>>, vector<8x1xi32>
    %c0_3 = arith.constant 0 : index
    %c0_4 = arith.constant 0 : index
    %2 = vector.load %arg3[%c0_3, %c0_4] : memref<8x1xf32, #tpu.memory_space<vmem>>, vector<8x1xf32>
    %c0_5 = arith.constant 0 : index
    %c0_6 = arith.constant 0 : index
    %3 = vector.load %arg4[%c0_5, %c0_6] : memref<8x1xf32, #tpu.memory_space<vmem>>, vector<8x1xf32>
    %4 = tpu.iota {dimensions = array<i32: 1>} : vector<1x16xi32>
    %5 = vector.broadcast %4 : vector<1x16xi32> to vector<8x16xi32>
    %6 = vector.broadcast %1 : vector<8x1xi32> to vector<8x16xi32>
    %7 = arith.cmpi eq, %5, %6 : vector<8x16xi32>
    %cst = arith.constant dense<0xFF800000> : vector<8xf32>
    %8 = vector.multi_reduction <maximumf>, %0, %cst [1] : vector<8x16xf32> to vector<8xf32>
    %9 = vector.shape_cast %8 : vector<8xf32> to vector<8x1xf32>
    %10 = vector.broadcast %9 : vector<8x1xf32> to vector<8x16xf32>
    %11 = arith.subf %0, %10 : vector<8x16xf32>
    %12 = math.exp %11 : vector<8x16xf32>
    %cst_7 = arith.constant 0.000000e+00 : f32
    %13 = vector.broadcast %cst_7 : f32 to vector<8x16xf32>
    %14 = arith.select %7, %13, %12 : vector<8x16xi1>, vector<8x16xf32>
    %cst_8 = arith.constant dense<0.000000e+00> : vector<8xf32>
    %15 = vector.multi_reduction <add>, %14, %cst_8 [1] : vector<8x16xf32> to vector<8xf32>
    %16 = vector.shape_cast %15 : vector<8xf32> to vector<8x1xf32>
    %cst_9 = arith.constant 0.000000e+00 : f32
    %17 = vector.broadcast %cst_9 : f32 to vector<8x16xf32>
    %18 = arith.select %7, %0, %17 : vector<8x16xi1>, vector<8x16xf32>
    %cst_10 = arith.constant dense<0.000000e+00> : vector<8xf32>
    %19 = vector.multi_reduction <add>, %18, %cst_10 [1] : vector<8x16xf32> to vector<8xf32>
    %20 = vector.shape_cast %19 : vector<8xf32> to vector<8x1xf32>
    %21 = arith.mulf %20, %2 : vector<8x1xf32>
    %22 = arith.subf %21, %3 : vector<8x1xf32>
    %23 = arith.maximumf %9, %22 : vector<8x1xf32>
    %24 = arith.subf %9, %23 : vector<8x1xf32>
    %25 = math.exp %24 : vector<8x1xf32>
    %26 = arith.mulf %16, %25 : vector<8x1xf32>
    %27 = arith.subf %22, %23 : vector<8x1xf32>
    %28 = math.exp %27 : vector<8x1xf32>
    %29 = arith.addf %26, %28 : vector<8x1xf32>
    %30 = math.log %29 : vector<8x1xf32>
    %31 = arith.addf %30, %23 : vector<8x1xf32>
    %32 = arith.subf %31, %22 : vector<8x1xf32>
    %33 = vector.shape_cast %32 : vector<8x1xf32> to vector<1x8x1xf32>
    %cst_11 = arith.constant dense<0.000000e+00> : vector<1xf32>
    %34 = vector.multi_reduction <add>, %33, %cst_11 [1, 2] : vector<1x8x1xf32> to vector<1xf32>
    %35 = vector.shape_cast %34 : vector<1xf32> to vector<1x1x1xf32>
    %36 = vector.extract %35[0, 0, 0] : f32 from vector<1x1x1xf32>
    %37 = tpu.iota {dimensions = array<i32: 1>} : vector<8x128xi32>
    %c0_i32 = arith.constant 0 : i32
    %38 = vector.broadcast %c0_i32 : i32 to vector<8x128xi32>
    %39 = arith.cmpi eq, %37, %38 : vector<8x128xi32>
    %c1_i32 = arith.constant 1 : i32
    %40 = vector.broadcast %c1_i32 : i32 to vector<8x128xi32>
    %41 = arith.cmpi eq, %37, %40 : vector<8x128xi32>
    %cst_12 = arith.constant 8.000000e+00 : f32
    %cst_13 = arith.constant 0.000000e+00 : f32
    %42 = vector.broadcast %cst_12 : f32 to vector<8x128xf32>
    %43 = vector.broadcast %cst_13 : f32 to vector<8x128xf32>
    %44 = arith.select %41, %42, %43 : vector<8x128xi1>, vector<8x128xf32>
    %45 = vector.broadcast %36 : f32 to vector<8x128xf32>
    %46 = arith.select %39, %45, %44 : vector<8x128xi1>, vector<8x128xf32>
    %c0_14 = arith.constant 0 : index
    %c0_15 = arith.constant 0 : index
    %c0_16 = arith.constant 0 : index
    %47 = vector.load %arg5[%c0_14, %c0_15, %c0_16] : memref<1x8x128xf32, #tpu.memory_space<vmem>>, vector<1x8x128xf32>
    %48 = vector.shape_cast %47 : vector<1x8x128xf32> to vector<8x128xf32>
    %49 = vector.shape_cast %46 : vector<8x128xf32> to vector<1x8x128xf32>
    tpu.vector_store %arg5[%c0_14, %c0_15, %c0_16], %49 {strides = array<i32>} : memref<1x8x128xf32, #tpu.memory_space<vmem>>, vector<1x8x128xf32>,
    return
  }
  func.func @transform_0(%arg0: i32) -> (i32, i32) {
    %c0_i32 = arith.constant 0 : i32
    %c0_i32_0 = arith.constant 0 : i32
    return %arg0, %c0_i32 : i32, i32
  }
  func.func @transform_1(%arg0: i32) -> (i32, i32) {
    %c0_i32 = arith.constant 0 : i32
    %c0_i32_0 = arith.constant 0 : i32
    return %arg0, %c0_i32 : i32, i32
  }
  func.func @transform_2(%arg0: i32) -> (i32, i32) {
    %c0_i32 = arith.constant 0 : i32
    %c0_i32_0 = arith.constant 0 : i32
    return %arg0, %c0_i32 : i32, i32
  }
  func.func @transform_3(%arg0: i32) -> (i32, i32) {
    %c0_i32 = arith.constant 0 : i32
    %c0_i32_0 = arith.constant 0 : i32
    return %arg0, %c0_i32 : i32, i32
  }
  func.func @transform_4(%arg0: i32) -> (i32, i32, i32) {
    %c0_i32 = arith.constant 0 : i32
    %c0_i32_0 = arith.constant 0 : i32
    %c0_i32_1 = arith.constant 0 : i32
    return %arg0, %c0_i32, %c0_i32_0 : i32, i32, i32
  }
}

</mosaic_0001>

<llo_original>
// kernel: tpu_custom_call.1
$region0: #{tpu_custom_call.1}
  #allocation0 [shape = 'u32[]', space=smem, size = 0x4, offset = 0x4, fixed_abs, tag = 'smem constant byte address 0x4 - core index']
  #allocation1 [shape = 'u32[144,128]{1,0:T(1,128)}', space=vmem, size = 0x12000, scoped, tag = 'internal scratch']
  %s0 = inlined_call_operand.vmem [shape: f32[8,16], index: 0, kind: input, shape index: {}]
  %s1 = inlined_call_operand.vmem [shape: s32[8,1], index: 1, kind: input, shape index: {}]
  %s2 = inlined_call_operand.vmem [shape: f32[8,1], index: 2, kind: input, shape index: {}]
  %s3 = inlined_call_operand.vmem [shape: f32[8,1], index: 3, kind: input, shape index: {}]
  %s4 = inlined_call_operand.hbm [shape: f32[1,8,128], index: 4, kind: output, shape index: {}]
  %s5 = sld [smem:[#allocation0]]
  $region26: #{tpu_custom_call.1} parent=0
    _
  %s7 = ssub.s32 1, %s5
  %s8 = scalar_select 0, %s7, %s5
  $region1: #{tpu_custom_call.1} parent=0
    #allocation2 [shape = 'u8[4096]{0}', space=vmem, size = 0x1000, scoped, tag = 'output window, operand 0, single buffered']
    #allocation3 [shape = 's32[1]{0}', space=sflag, size = 0x4, scoped, tag = 'scoped memory for tpu_custom_call.1']
    %9 = vsyncpa [#allocation3], 0
    // Predicated region
    $region2: #{tpu_custom_call.1} parent=1 // pred_check
      _
    $region3: #{tpu_custom_call.1} parent=1 // pred_check_branch
      %11 = sbr.rel (0) target = $region5
    $region4: #{tpu_custom_call.1} parent=1 // pred_region
      _
    $region5: #{tpu_custom_call.1} parent=1 // pred_fallthru
      _
    // Predicated region
    $region6: #{tpu_custom_call.1} parent=1 // pred_check
      _
    $region7: #{tpu_custom_call.1} parent=1 // pred_check_branch
      %13 = sbr.rel (0) target = $region9
    $region8: #{tpu_custom_call.1} parent=1 // pred_region
      _
    $region9: #{tpu_custom_call.1} parent=1 // pred_fallthru
      _
    // Predicated region
    $region10: #{tpu_custom_call.1} parent=1 // pred_check
      _
    $region11: #{tpu_custom_call.1} parent=1 // pred_check_branch
      %15 = sbr.rel (0) target = $region13
    $region12: #{tpu_custom_call.1} parent=1 // pred_region
      _
    $region13: #{tpu_custom_call.1} parent=1 // pred_fallthru
      _
    // Predicated region
    $region14: #{tpu_custom_call.1} parent=1 // pred_check
      _
    $region15: #{tpu_custom_call.1} parent=1 // pred_check_branch
      %17 = sbr.rel (0) target = $region17
    $region16: #{tpu_custom_call.1} parent=1 // pred_region
      _
    $region17: #{tpu_custom_call.1} parent=1 // pred_fallthru
      _
    %v18 = vld [vmem:[%s0] sm:$0xff]
    %v19 = vld [vmem:[%s1] sm:$0xff]
    %v20 = vld [vmem:[%s2] sm:$0xff]
    %v21 = vld [vmem:[%s3] sm:$0xff]
    %v22 = vlaneseq
    %v23 = vand.u32 %v22, 127
    %24 = vset.pattern.permute.xlu0 0
    %25 = vperm.xlu0 %24, %v19
    %v26 = vpop.permute.xlu0 %25
    %vm27 = vcmp.eq.s32.totalorder %v23, %v26
    %vm28 = vcmask 130048
    %v29 = vsel %vm28, %v18, -inf
    %30 = vmax.xlane.f32.xlu0 %v29
    %v31 = vpop.xlane.xlu0 %30
    %v32 = vsub.f32 %v18, %v31
    %v33 = vmul.f32 %v32, 1.442695
    %v34 = vpow.pop %v33
    %v35 = vsel %vm27, 0.0, %v34
    %v36 = vsel %vm28, %v35, 0.0
    %37 = vadd.xlane.f32.xlu0 %v36
    %v38 = vpop.xlane.xlu0 %37
    %v39 = vsel %vm27, %v18, 0.0
    %v40 = vsel %vm28, %v39, 0.0
    %41 = vadd.xlane.f32.xlu0 %v40
    %v42 = vpop.xlane.xlu0 %41
    %v43 = vmul.f32 %v42, %v20
    %v44 = vsub.f32 %v43, %v21
    %v45 = vmax.f32 %v31, %v44
    %v46 = vsub.f32 %v31, %v45
    %v47 = vmul.f32 %v46, 1.442695
    %v48 = vpow.pop %v47
    %v49 = vmul.f32 %v38, %v48
    %v50 = vsub.f32 %v44, %v45
    %v51 = vmul.f32 %v50, 1.442695
    %v52 = vpow.pop %v51
    %v53 = vadd.f32 %v49, %v52
    %v54 = vlog2.pop %v53
    %v55 = vmul.f32 %v54, 0.6931472
    %v56 = vadd.f32 %v55, %v45
    %v57 = vsub.f32 %v56, %v44
    %vm58 = vcmask 7168
    %v59 = vsel %vm58, %v57, 0.0
    %60 = vadd.xlane.f32.xlu0 %v59
    %v61 = vpop.xlane.xlu0 %60
    %v62 = vrot.slane %v61, 4
    %v63 = vadd.f32 %v61, %v62
    %v64 = vrot.slane %v63, 2
    %v65 = vadd.f32 %v63, %v64
    %v66 = vrot.slane %v65, 1
    %v67 = vadd.f32 %v65, %v66
    %s68 = vtos %v67
    %vm69 = vcmp.eq.s32.totalorder %v23, 0
    %vm70 = vcmp.eq.s32.totalorder %v23, 1
    %v71 = vsel %vm70, 8.0, 0.0
    %v72 = vstv %s68
    %v73 = vsel %vm69, %v72, %v71
    %74 = vst [vmem:[#allocation2] sm:$0xff] %v73
    // Predicated region
    $region18: #{tpu_custom_call.1} parent=1 // pred_check
      _
    $region19: #{tpu_custom_call.1} parent=1 // pred_check_branch
      %76 = sbr.rel (0) target = $region21
    $region20: #{tpu_custom_call.1} parent=1 // pred_region
      %s78 = ssub.s32 128, 128
      %79 = vsyncadd [#allocation3], %s78
      %s81 = sshll.u32 [#allocation2], 4
      %s82 = int_to_ptr.vmem [resolvable:$true] %s81
      %84 = dma.vmem_to_hbm [thread:$0]  %s82, 128, %s4, [#allocation3]
    $region21: #{tpu_custom_call.1} parent=1 // pred_fallthru
      _
    // Predicated region
    $region22: #{tpu_custom_call.1} parent=1 // pred_check
      _
    $region23: #{tpu_custom_call.1} parent=1 // pred_check_branch
      %86 = sbr.rel (0) target = $region25
    $region24: #{tpu_custom_call.1} parent=1 // pred_region
      %87 = dma.done [#allocation3], 128
    $region25: #{tpu_custom_call.1} parent=1 // pred_fallthru
      _
    %88 = vsyncpa [#allocation3], 1

</llo_original>
